<compile_context>
chip_gen: v5e
topology: v5e:2x2
jax: 0.10.0
libtpu: 0.0.40
codegen_flags: <defaults>
</compile_context>

<pallas_src>
import functools
import math

import jax
import jax.numpy as jnp
from jax import lax
from jax.experimental import pallas as pl
from jax.experimental.pallas import tpu as pltpu


LANES = 128
SUBLANES = 8
MAX_TILE_ROWS = 4096     # (4096,128) f32 tile = 2 MiB/buffer; x2 double-buffer = 4 MiB


def _cdiv(a, b):
    return -(-a // b)


def _device_kind():
    try:
        return jax.devices()[0].device_kind.lower()
    except Exception:
        return ""


def _num_cores():
    """TensorCores per chip the leading grid axis can shard across."""
    kind = _device_kind()
    return 2 if ("v7" in kind or "7x" in kind) else 1      # v5e / v6e: single TC


_DTYPE_CACHE = {}


def _pick_compute_dtype():
    """bf16 transcendentals on bf16-capable-EUP chips (v6e/v7x), f32 otherwise."""
    kind = _device_kind()
    if kind not in _DTYPE_CACHE:
        _DTYPE_CACHE[kind] = (
            jnp.bfloat16 if ("v6" in kind or "v7" in kind or "7x" in kind)
            else jnp.float32)
    return _DTYPE_CACHE[kind]


def _round_loss_kernel(b_ref, sb_ref, out_ref, acc_ref, *,
                       rows, row_tile, nb, nbpc, has_tail, compute_dtype):
    """Accumulate sum(|2*sb-1|**b) for this core-slice into an (8,128) partial."""
    c = pl.program_id(0)          # core-slice index ("parallel")
    t = pl.program_id(1)          # row-block index inside the slice ("arbitrary")
    bid = c * nbpc + t            # un-clamped global row-block id

    @pl.when(t == 0)
    def _():
        acc_ref[...] = jnp.zeros_like(acc_ref)

    def tile_powb():
        # |2x-1|**b via exp(b*log u): log(0) -> -inf -> exp -> 0 == pow(0,b), b > 0.
        x = sb_ref[...].astype(jnp.float32)                 # (row_tile, 128)
        u = jnp.abs(2.0 * x - 1.0)                          # in [0, 1], f32
        lg = jnp.log(u.astype(compute_dtype))               # EUP (bf16 on v6e/v7x)
        b = b_ref[0].astype(compute_dtype)                  # SMEM scalar temperature
        return jnp.exp(b * lg).astype(jnp.float32)          # f32 partials

    def fold(v):
        # vreg-aligned sublane-group tree reduction -> (8,128); pure VALU adds.
        return jnp.sum(v.reshape(row_tile // SUBLANES, SUBLANES, LANES), axis=0)

    nb_full = nb - 1 if has_tail else nb

    @pl.when(bid < nb_full)                                 # interior tiles: mask-free
    def _():
        acc_ref[...] += fold(tile_powb())

    if has_tail:                                            # static: traced only if ragged
        @pl.when(bid == nb - 1)                             # single partial last block
        def _():
            grow = (nb - 1) * row_tile + lax.broadcasted_iota(
                jnp.int32, (row_tile, LANES), 0)
            acc_ref[...] += fold(jnp.where(grow < rows, tile_powb(), 0.0))

    # Clamped duplicate blocks (bid >= nb) skip compute entirely.

    @pl.when(t == nbpc - 1)
    def _():
        out_ref[...] = acc_ref[...][None]                   # plain (1,8,128) copy


@functools.partial(jax.jit, static_argnames=("compute_dtype",))
def _round_loss_sum(sb, b, *, compute_dtype):
    """sum(1 - |2*sb-1|**b) computed as count - sum(|2*sb-1|**b)."""
    flat = sb.reshape(-1)                                   # native dtype, no host cast
    n = flat.shape[0]
    # Pad only to a lane multiple (needed for the (rows,128) reshape).  Zero pads
    # have |2*0-1|**b == 1 exactly and are cancelled by counting them below.
    pad = (-n) % LANES
    if pad:
        flat = jnp.pad(flat, (0, pad))
    rows = flat.shape[0] // LANES
    if rows < SUBLANES:                                     # tiny input: round up to 1 vreg
        flat = jnp.pad(flat, (0, (SUBLANES - rows) * LANES))
        rows = SUBLANES
    total = rows * LANES                                    # counted (real + zero-pad) elems
    sb2d = flat.reshape(rows, LANES)                        # lane-dense slab (free reshape)

    row_tile = min(MAX_TILE_ROWS, (rows // SUBLANES) * SUBLANES)   # multiple of 8
    nb = _cdiv(rows, row_tile)                              # total row blocks
    ncore = _num_cores()
    nbpc = _cdiv(nb, ncore)                                 # row blocks per core slice
    has_tail = (rows % row_tile) != 0

    kernel = functools.partial(
        _round_loss_kernel, rows=rows, row_tile=row_tile, nb=nb, nbpc=nbpc,
        has_tail=has_tail, compute_dtype=compute_dtype)

    partials = pl.pallas_call(
        kernel,
        out_shape=jax.ShapeDtypeStruct((ncore, SUBLANES, LANES), jnp.float32),
        grid_spec=pltpu.PrefetchScalarGridSpec(
            num_scalar_prefetch=1,                          # b -> SMEM scalar
            grid=(ncore, nbpc),
            in_specs=[
                pl.BlockSpec(
                    (row_tile, LANES),
                    # clamp: fully-out-of-range blocks re-read the last real block;
                    # their compute is skipped in-kernel via pl.when.
                    lambda c, t, b_ref: (jnp.minimum(c * nbpc + t, nb - 1), 0)),
            ],
            out_specs=pl.BlockSpec((1, SUBLANES, LANES),
                                   lambda c, t, b_ref: (c, 0, 0)),
            scratch_shapes=[pltpu.VMEM((SUBLANES, LANES), jnp.float32)],
        ),
        # TODO(synk): on v7x, verify from the bundle/trace that the leading
        # "parallel" axis actually shards across both TensorCores; if not,
        # switch it to pltpu.CORE_PARALLEL.
        compiler_params=pltpu.CompilerParams(
            dimension_semantics=("parallel", "arbitrary")),
    )(b, sb2d)

    return jnp.float32(total) - jnp.sum(partials)


class LinearTempDecay:
    def __init__(self, t_max, rel_start_decay, start_b, end_b):
        self.t_max = t_max
        self.start_decay = rel_start_decay * t_max
        self.start_b = start_b
        self.end_b = end_b

    def __call__(self, t):
        if t < self.start_decay:
            return self.start_b
        rel_t = (t - self.start_decay) / (self.t_max - self.start_decay)
        return self.end_b + (self.start_b - self.end_b) * max(0.0, 1 - rel_t)


class RoundLoss:
    """JAX/Pallas port of the PyTorch RoundLoss module."""

    def __init__(self, max_count, b_range, decay_start, warmup, p_norm):
        self.loss_start = max_count * warmup
        self.temp_decay = LinearTempDecay(
            max_count,
            rel_start_decay=warmup + (1 - warmup) * decay_start,
            start_b=b_range[0],
            end_b=b_range[1],
        )
        self.p_norm = p_norm   # stored but unused in forward (matches PyTorch)
        self.b = 0

    def __call__(self, iter_count, sb):
        # Host-side scalar schedule (pure Python control flow, same as PyTorch).
        # NOTE: returns Python int 0 before loss_start but a traced f32 scalar
        # afterwards (matches the PyTorch module's type behavior).
        if iter_count < self.loss_start:
            return 0
        self.b = self.temp_decay(iter_count)
        b_arr = jnp.asarray([self.b], dtype=jnp.float32)
        return _round_loss_sum(sb, b_arr, compute_dtype=_pick_compute_dtype())


def _reference(round_loss, iter_count, sb):
    """Pure-JAX reference matching the PyTorch semantics (f32)."""
    if iter_count < round_loss.loss_start:
        return jnp.float32(0.0)
    b = round_loss.temp_decay(iter_count)
    return jnp.sum(1.0 - jnp.power(jnp.abs(2.0 * sb.astype(jnp.float32) - 1.0), b))


if __name__ == "__main__":
    key = jax.random.PRNGKey(0)
    max_count = 1000
    module = RoundLoss(max_count=max_count, b_range=(20.0, 2.0),
                       decay_start=0.0, warmup=0.2, p_norm=2.0)

    if _pick_compute_dtype() == jnp.bfloat16:
        rel_tol, abs_tol = 3e-2, 1e-1     # bf16 EUP path (regularizer-grade precision)
    else:
        rel_tol, abs_tol = 1e-4, 1e-3     # f32 path

    # sb: soft-bit / rounding-policy tensor, sigmoid-like values in (0, 1).
    sb = jax.random.uniform(key, (2, 4, 16, 16), dtype=jnp.float32)

    # Before loss_start: returns 0 (host scalar, no kernel launch).
    assert module(100, sb) == 0

    # After loss_start: kernel path.
    iter_count = 600
    out = jax.block_until_ready(module(iter_count, sb))
    ref = jax.block_until_ready(_reference(module, iter_count, sb))
    assert math.isclose(float(out), float(ref), rel_tol=rel_tol, abs_tol=abs_tol), (
        f"mismatch: {float(out)} vs {float(ref)}")

    # Ragged element count: exercises lane padding + in-kernel partial-block mask.
    sb2 = jax.random.uniform(jax.random.PRNGKey(1), (3, 5, 7, 11), dtype=jnp.float32)
    out2 = jax.block_until_ready(module(iter_count, sb2))
    ref2 = jax.block_until_ready(_reference(module, iter_count, sb2))
    assert math.isclose(float(out2), float(ref2), rel_tol=rel_tol, abs_tol=abs_tol), (
        f"mismatch(ragged): {float(out2)} vs {float(ref2)}")

    print("KERNEL_OK")
</pallas_src>

<mosaic_0001>
module attributes {stable_mosaic.version = 11 : i64} {
  func.func @_round_loss_kernel(%arg0: i32, %arg1: i32, %arg2: memref<1xf32, #tpu.memory_space<smem>>, %arg3: memref<16x128xf32, #tpu.memory_space<vmem>>, %arg4: memref<1x8x128xf32, #tpu.memory_space<vmem>>, %arg5: memref<8x128xf32, #tpu.memory_space<vmem>>) attributes {dimension_semantics = [#tpu.dimension_semantics<parallel>, #tpu.dimension_semantics<arbitrary>], iteration_bounds = array<i64: 1, 1>, scalar_prefetch = 1 : i64, scratch_operands = 1 : i64, tpu.core_type = #tpu.core_type<tc>, window_params = [{transform_indices = @transform_0, window_bounds = array<i64: 16, 128>}, {transform_indices = @transform_1, window_bounds = array<i64: 1, 8, 128>}]} {
    %c1_i32 = arith.constant 1 : i32
    %0 = arith.muli %arg0, %c1_i32 : i32
    %1 = arith.addi %0, %arg1 : i32
    %c0_i32 = arith.constant 0 : i32
    %2 = arith.cmpi eq, %arg1, %c0_i32 : i32
    %3 = arith.extui %2 : i1 to i32
    %c0_i32_0 = arith.constant 0 : i32
    %4 = arith.cmpi ne, %3, %c0_i32_0 : i32
    scf.if %4 {
      %cst = arith.constant 0.000000e+00 : f32
      %11 = vector.broadcast %cst : f32 to vector<8x128xf32>
      %c0 = arith.constant 0 : index
      %c0_5 = arith.constant 0 : index
      %12 = vector.load %arg5[%c0, %c0_5] : memref<8x128xf32, #tpu.memory_space<vmem>>, vector<8x128xf32>
      tpu.vector_store %arg5[%c0, %c0_5], %11 {strides = array<i32>} : memref<8x128xf32, #tpu.memory_space<vmem>>, vector<8x128xf32>,
    } else {
    }
    %c1_i32_1 = arith.constant 1 : i32
    %5 = arith.cmpi slt, %1, %c1_i32_1 : i32
    %6 = arith.extui %5 : i1 to i32
    %c0_i32_2 = arith.constant 0 : i32
    %7 = arith.cmpi ne, %6, %c0_i32_2 : i32
    scf.if %7 {
      %c0 = arith.constant 0 : index
      %c0_5 = arith.constant 0 : index
      %11 = vector.load %arg5[%c0, %c0_5] : memref<8x128xf32, #tpu.memory_space<vmem>>, vector<8x128xf32>
      %c0_6 = arith.constant 0 : index
      %c0_7 = arith.constant 0 : index
      %12 = vector.load %arg3[%c0_6, %c0_7] : memref<16x128xf32, #tpu.memory_space<vmem>>, vector<16x128xf32>
      %cst = arith.constant 2.000000e+00 : f32
      %13 = vector.broadcast %cst : f32 to vector<16x128xf32>
      %14 = arith.mulf %13, %12 : vector<16x128xf32>
      %cst_8 = arith.constant 1.000000e+00 : f32
      %15 = vector.broadcast %cst_8 : f32 to vector<16x128xf32>
      %16 = arith.subf %14, %15 : vector<16x128xf32>
      %17 = math.absf %16 : vector<16x128xf32>
      %18 = math.log %17 : vector<16x128xf32>
      %c0_9 = arith.constant 0 : index
      %19 = memref.load %arg2[%c0_9] : memref<1xf32, #tpu.memory_space<smem>>
      %20 = vector.broadcast %19 : f32 to vector<16x128xf32>
      %21 = arith.mulf %20, %18 : vector<16x128xf32>
      %22 = math.exp %21 : vector<16x128xf32>
      %23 = vector.shape_cast %22 : vector<16x128xf32> to vector<2x8x128xf32>
      %cst_10 = arith.constant dense<0.000000e+00> : vector<8x128xf32>
      %24 = vector.multi_reduction <add>, %23, %cst_10 [0] : vector<2x8x128xf32> to vector<8x128xf32>
      %25 = arith.addf %11, %24 : vector<8x128xf32>
      %c0_11 = arith.constant 0 : index
      %c0_12 = arith.constant 0 : index
      %26 = vector.load %arg5[%c0_11, %c0_12] : memref<8x128xf32, #tpu.memory_space<vmem>>, vector<8x128xf32>
      tpu.vector_store %arg5[%c0_11, %c0_12], %25 {strides = array<i32>} : memref<8x128xf32, #tpu.memory_space<vmem>>, vector<8x128xf32>,
    } else {
    }
    %c0_i32_3 = arith.constant 0 : i32
    %8 = arith.cmpi eq, %arg1, %c0_i32_3 : i32
    %9 = arith.extui %8 : i1 to i32
    %c0_i32_4 = arith.constant 0 : i32
    %10 = arith.cmpi ne, %9, %c0_i32_4 : i32
    scf.if %10 {
      %c0 = arith.constant 0 : index
      %c0_5 = arith.constant 0 : index
      %11 = vector.load %arg5[%c0, %c0_5] : memref<8x128xf32, #tpu.memory_space<vmem>>, vector<8x128xf32>
      %12 = vector.shape_cast %11 : vector<8x128xf32> to vector<1x8x128xf32>
      %c0_6 = arith.constant 0 : index
      %c0_7 = arith.constant 0 : index
      %c0_8 = arith.constant 0 : index
      %13 = vector.load %arg4[%c0_6, %c0_7, %c0_8] : memref<1x8x128xf32, #tpu.memory_space<vmem>>, vector<1x8x128xf32>
      tpu.vector_store %arg4[%c0_6, %c0_7, %c0_8], %12 {strides = array<i32>} : memref<1x8x128xf32, #tpu.memory_space<vmem>>, vector<1x8x128xf32>,
    } else {
    }
    return
  }
  func.func @transform_0(%arg0: i32, %arg1: i32, %arg2: memref<1xf32, #tpu.memory_space<smem>>) -> (i32, i32) {
    %c1_i32 = arith.constant 1 : i32
    %0 = arith.muli %arg0, %c1_i32 : i32
    %1 = arith.addi %0, %arg1 : i32
    %c0_i32 = arith.constant 0 : i32
    %2 = arith.minsi %1, %c0_i32 : i32
    %c0_i32_0 = arith.constant 0 : i32
    %c0_i32_1 = arith.constant 0 : i32
    return %2, %c0_i32_0 : i32, i32
  }
  func.func @transform_1(%arg0: i32, %arg1: i32, %arg2: memref<1xf32, #tpu.memory_space<smem>>) -> (i32, i32, i32) {
    %c0_i32 = arith.constant 0 : i32
    %c0_i32_0 = arith.constant 0 : i32
    %c0_i32_1 = arith.constant 0 : i32
    return %arg0, %c0_i32, %c0_i32_0 : i32, i32, i32
  }
}

</mosaic_0001>

<llo_original>
// kernel: _round_loss_sum.1
$region0: #{_round_loss_sum.1}
  #allocation0 [shape = 'u32[]', space=smem, size = 0x4, offset = 0x4, fixed_abs, tag = 'smem constant byte address 0x4 - core index']
  #allocation1 [shape = 'u32[72,128]{1,0:T(1,128)}', space=vmem, size = 0x9000, scoped, tag = 'internal scratch']
  #allocation2 [shape = 'f32[8,128]{1,0:T(8,128)}', space=vmem, size = 0x1000, scoped, tag = 'scratch operand']
  #allocation3 [shape = 's32[1]{0}', space=sflag, size = 0x4, scoped, tag = 'scoped memory for _round_loss_sum.1']
  #allocation4 [shape = 'f32[1]{0:T(128)S(6)}', space=smem, size = 0x200, scoped, tag = 'prefetched SMEM operand 0']
  %s0 = inlined_call_operand.<no memory space> [shape: f32[1], index: 0, kind: input, shape index: {}]
  %s1 = inlined_call_operand.vmem [shape: f32[16,128], index: 1, kind: input, shape index: {}]
  %s2 = inlined_call_operand.vmem [shape: f32[1,8,128], index: 2, kind: output, shape index: {}]
  %s3 = sld [smem:[#allocation0]]
  $region26: #{_round_loss_sum.1} parent=0
    _
  %s5 = ssub.s32 1, %s3
  %s6 = scalar_select 0, %s5, %s3
  %7 = sst [smem:[#allocation4]] %s0
  // Predicated region
  $region2: #{_round_loss_sum.1} parent=0 // pred_check
    _
  $region3: #{_round_loss_sum.1} parent=0 // pred_check_branch
    %9 = sbr.rel (0) target = $region5
  $region4: #{_round_loss_sum.1} parent=0 // pred_region
    %s10 = sadd.s32 0, 0
    %p11 = scmp.lt.s32.totalorder %s10, 0
    %s12 = scalar_select %p11, %s10, 0
    %s13 = smul.u32 2, %s12
    %p14 = scmp.lt.s32.totalorder %s13, 1
    %s15 = scalar_select %p14, %s13, 1
    %s16 = smul.addr %s15, 8
    %s17 = scalar_lea.vmem %s1, %s16
    %s18 = sadd.s32 0, 0
    %p19 = scmp.lt.s32.totalorder %s18, 0
    %s20 = scalar_select %p19, %s18, 0
    %s21 = smul.u32 2, %s20
  $region5: #{_round_loss_sum.1} parent=0 // pred_fallthru
    _
  %s22 = sadd.s32 0, 0
  %p23 = scmp.lt.s32.totalorder %s22, 0
  %s24 = scalar_select %p23, %s22, 0
  %s25 = smul.u32 2, %s24
  %p26 = scmp.lt.s32.totalorder %s25, 1
  %s27 = scalar_select %p26, %s25, 1
  %s28 = smul.addr %s27, 8
  %s29 = scalar_lea.vmem %s1, %s28
  %s30 = sadd.s32 0, 0
  %p31 = scmp.lt.s32.totalorder %s30, 0
  %s32 = scalar_select %p31, %s30, 0
  %s33 = smul.u32 2, %s32
  %p34 = scmp.lt.s32.totalorder %s33, 1
  %s35 = scalar_select %p34, %s33, 1
  %s36 = smul.addr %s35, 8
  %s37 = scalar_lea.vmem %s1, %s36
  %s38 = sadd.s32 0, 0
  %p39 = scmp.lt.s32.totalorder %s38, 0
  %s40 = scalar_select %p39, %s38, 0
  %s41 = smul.u32 2, %s40
  %s42 = sadd.s32 0, 0
  %p43 = scmp.eq.s32.totalorder 0, 0
  // Predicated region
  $region6: #{_round_loss_sum.1} parent=0 // pred_check
    %p44 = pneg %p43
  $region7: #{_round_loss_sum.1} parent=0 // pred_check_branch
    %46 = sbr.rel (%p44) target = $region9
  $region8: #{_round_loss_sum.1} parent=0 // pred_region
    %47 = vst [vmem:[#allocation2] sm:$0xff] 0.0
  $region9: #{_round_loss_sum.1} parent=0 // pred_fallthru
    _
  %p48 = scmp.lt.s32.totalorder %s42, 1
  // Predicated region
  $region10: #{_round_loss_sum.1} parent=0 // pred_check
    %p49 = pneg %p48
  $region11: #{_round_loss_sum.1} parent=0 // pred_check_branch
    %51 = sbr.rel (%p49) target = $region13
  $region12: #{_round_loss_sum.1} parent=0 // pred_region
    %v52 = vld [vmem:[#allocation2] sm:$0xff]
    %v53 = vld [vmem:[%s37] sm:$0xff]
    %v54 = vld [vmem:[%s37 + $0x8] sm:$0xff]
    %v55 = vmul.f32 %v53, 2.0
    %v56 = vmul.f32 %v54, 2.0
    %v57 = vsub.f32 %v55, 1.0
    %v58 = vsub.f32 %v56, 1.0
    %v59 = vand.u32 2147483647, %v57
    %v60 = vand.u32 2147483647, %v58
    %v61 = vlog2.pop %v59
    %v62 = vmul.f32 %v61, 0.6931472
    %v63 = vlog2.pop %v60
    %v64 = vmul.f32 %v63, 0.6931472
    %s65 = sld [smem:[#allocation4]]
    %v66 = vstv %s65
    %v67 = vmul.f32 %v66, %v62
    %v68 = vmul.f32 %v66, %v64
    %v69 = vmul.f32 %v67, 1.442695
    %v70 = vpow.pop %v69
    %v71 = vmul.f32 %v68, 1.442695
    %v72 = vpow.pop %v71
    %v73 = vadd.f32 %v70, %v72
    %v74 = vadd.f32 %v52, %v73
    %75 = vst [vmem:[#allocation2] sm:$0xff] %v74
  $region13: #{_round_loss_sum.1} parent=0 // pred_fallthru
    _
  // Predicated region
  $region14: #{_round_loss_sum.1} parent=0 // pred_check
    %p76 = pneg %p43
  $region15: #{_round_loss_sum.1} parent=0 // pred_check_branch
    %78 = sbr.rel (%p76) target = $region17
  $region16: #{_round_loss_sum.1} parent=0 // pred_region
    %v79 = vld [vmem:[#allocation2] sm:$0xff]
    %80 = vst [vmem:[%s2] sm:$0xff] %v79
  $region17: #{_round_loss_sum.1} parent=0 // pred_fallthru
    _
  // Predicated region
  $region18: #{_round_loss_sum.1} parent=0 // pred_check
    _
  $region19: #{_round_loss_sum.1} parent=0 // pred_check_branch
    %82 = sbr.rel (0) target = $region21
  $region20: #{_round_loss_sum.1} parent=0 // pred_region
    _
  $region21: #{_round_loss_sum.1} parent=0 // pred_fallthru
    _
  // Predicated region
  $region22: #{_round_loss_sum.1} parent=0 // pred_check
    _
  $region23: #{_round_loss_sum.1} parent=0 // pred_check_branch
    %84 = sbr.rel (0) target = $region25
  $region24: #{_round_loss_sum.1} parent=0 // pred_region
    _
  $region25: #{_round_loss_sum.1} parent=0 // pred_fallthru
    _

</llo_original>
